<compile_context>
chip_gen: v5e
topology: v5e:2x2
jax: 0.10.0
libtpu: 0.0.40
codegen_flags: <defaults>
</compile_context>

<pallas_src>
import jax
import jax.numpy as jnp
from jax.experimental import pallas as pl
from jax.experimental.pallas import tpu as pltpu

IN_FEATURES = 118
HIDDEN_SIZE = 64
MERGED = 2 * HIDDEN_SIZE          # 128 = concat(path1, path2)
DROPOUT_RATE = 0.3                # Dropout is identity at inference
BN_EPS = 1e-5


# --------------------------------------------------------------------------
# Kernel: one fused forward pass per batch tile.
#   x    : (tb, 118)  f32 (or bf16)
#   wm   : (118, 128) bf16   merged, BN-folded fc1 of path1|path2
#   wc   : (128, 64)  bf16   BN-folded combine Linear
#   w3   : (64, 32)   bf16   BN-folded classifier Linear
#   slab : (8, 128)   f32    row0=b_merged(128) row1=bc(64) row2=b3(32)
#                            row3=w4 row(32)    row4=[b4, 0, ...]
#   out  : (1, tb)    f32    lane-dense sigmoid outputs for this tile
# --------------------------------------------------------------------------
def _mlp_kernel(x_ref, wm_ref, wc_ref, w3_ref, slab_ref, out_ref):
    x = x_ref[...].astype(jnp.bfloat16)              # (tb, 118)

    b_m = slab_ref[0:1, :]                           # (1, 128)
    bc = slab_ref[1:2, 0:HIDDEN_SIZE]                # (1, 64)
    b3 = slab_ref[2:3, 0:HIDDEN_SIZE // 2]           # (1, 32)
    w4 = slab_ref[3:4, 0:HIDDEN_SIZE // 2]           # (1, 32)
    b4 = slab_ref[4:5, 0:1]                          # (1, 1)

    # Merged path1|path2: (tb,118) @ (118,128) -> h = [relu(h1) | relu(h2)]
    # (Mosaic masks the K=118 -> 128 contraction padding internally.)
    h = jnp.dot(x, wm_ref[...], preferred_element_type=jnp.float32) + b_m
    h = jnp.maximum(h, 0.0)

    # combine: Linear(128 -> 64) (+ folded BN) + ReLU   (Dropout = identity)
    c = jnp.dot(h.astype(jnp.bfloat16), wc_ref[...],
                preferred_element_type=jnp.float32) + bc
    c = jnp.maximum(c, 0.0)

    # classifier stage 1: Linear(64 -> 32) (+ folded BN) + ReLU
    z = jnp.dot(c.astype(jnp.bfloat16), w3_ref[...],
                preferred_element_type=jnp.float32) + b3
    z = jnp.maximum(z, 0.0)

    # classifier stage 2: Linear(32 -> 1) computed as (1,32) @ (32,tb) so the
    # result is a lane-dense (1, tb) row (unmasked stores on the output path).
    logits = jnp.dot(w4, z.T, preferred_element_type=jnp.float32) + b4  # (1, tb)

    # exact sigmoid (EUP exp + exact divide) -> guaranteed within [0, 1]
    out_ref[...] = (1.0 / (1.0 + jnp.exp(-logits))).astype(out_ref.dtype)


# --------------------------------------------------------------------------
# Host-side parameter construction with BatchNorm folding.
# --------------------------------------------------------------------------
def _fold_output_bn(w_t, b, mean, var, gamma, beta, eps=BN_EPS):
    """Fold BN applied AFTER a linear layer (y = BN(x @ W + b))."""
    s = gamma / jnp.sqrt(var + eps)
    return w_t * s[None, :], (b - mean) * s + beta


def _fold_input_bn(w_t, b, mean, var, gamma, beta, eps=BN_EPS):
    """Fold BN applied BEFORE a linear layer (y = BN(x) @ W + b)."""
    s = gamma / jnp.sqrt(var + eps)
    shift = beta - mean * s
    return w_t * s[:, None], b + shift @ w_t


def init_params(key):
    """Mirrors Model._initialize_weights():
       Linear: kaiming_normal_(mode='fan_out') -> std = sqrt(2 / out_features),
       bias = 0.  BatchNorm1d: gamma=1, beta=0, running stats (0, 1), eval."""
    H = HIDDEN_SIZE
    keys = jax.random.split(key, 5)

    def kaiming_fan_out(k, in_f, out_f):
        std = (2.0 / out_f) ** 0.5
        w_torch = jax.random.normal(k, (out_f, in_f), jnp.float32) * std
        return jnp.transpose(w_torch)                 # stored as (in, out)

    def bn_stats(n):
        return (jnp.zeros((n,), jnp.float32), jnp.ones((n,), jnp.float32),
                jnp.ones((n,), jnp.float32), jnp.zeros((n,), jnp.float32))

    # ---- path1 / path2 : fold input BN and bn1 into fc1, then merge ----
    def folded_path(k):
        w = kaiming_fan_out(k, IN_FEATURES, H)        # (118, 64)
        b = jnp.zeros((H,), jnp.float32)
        w, b = _fold_input_bn(w, b, *bn_stats(IN_FEATURES))
        w, b = _fold_output_bn(w, b, *bn_stats(H))
        return w, b

    w1, b1 = folded_path(keys[0])
    w2, b2 = folded_path(keys[1])
    wm = jnp.concatenate([w1, w2], axis=1)            # (118, 128) — no K pad
    b_merged = jnp.concatenate([b1, b2], axis=0)      # (128,)

    # ---- combine: Linear(2H -> H) + BN folded ----
    wc = kaiming_fan_out(keys[2], 2 * H, H)           # (128, 64)
    bc = jnp.zeros((H,), jnp.float32)
    wc, bc = _fold_output_bn(wc, bc, *bn_stats(H))

    # ---- classifier: Linear(H -> H/2) + BN folded, then Linear(H/2 -> 1) ----
    w3 = kaiming_fan_out(keys[3], H, H // 2)          # (64, 32)
    b3 = jnp.zeros((H // 2,), jnp.float32)
    w3, b3 = _fold_output_bn(w3, b3, *bn_stats(H // 2))

    w4 = kaiming_fan_out(keys[4], H // 2, 1)          # (32, 1)
    b4 = jnp.zeros((1,), jnp.float32)

    # ---- pack all small vectors into one (8, 128) slab ----
    slab = jnp.zeros((8, 128), jnp.float32)
    slab = slab.at[0, :].set(b_merged)
    slab = slab.at[1, :H].set(bc)
    slab = slab.at[2, :H // 2].set(b3)
    slab = slab.at[3, :H // 2].set(w4[:, 0])
    slab = slab.at[4, 0].set(b4[0])

    return (wm.astype(jnp.bfloat16),
            wc.astype(jnp.bfloat16),
            w3.astype(jnp.bfloat16),
            slab)


# --------------------------------------------------------------------------
# Wrapper
# --------------------------------------------------------------------------
def _batch_tile(batch):
    """<=128 rows: one full-array tile.  Larger: 128-aligned tiles (needed for
    the lane-dense output blocks), capped at 1024 rows, and sized so there are
    always >= 2 grid steps so both v7x TensorCores get work."""
    if batch <= 128:
        return batch
    half = -(-batch // 2)
    return min(1024, -(-half // 128) * 128)


@jax.jit
def model_forward(x, params):
    wm, wc, w3, slab = params
    batch = x.shape[0]

    tb = _batch_tile(batch)
    num_tiles = -(-batch // tb)
    out_cols = num_tiles * tb

    cost = pl.CostEstimate(
        flops=2 * batch * (IN_FEATURES * MERGED + MERGED * HIDDEN_SIZE
                           + HIDDEN_SIZE * (HIDDEN_SIZE // 2)
                           + (HIDDEN_SIZE // 2)),
        transcendentals=batch,
        bytes_accessed=(x.size * x.dtype.itemsize + out_cols * 4
                        + wm.size * 2 + wc.size * 2 + w3.size * 2
                        + slab.size * 4),
    )

    out_row = pl.pallas_call(
        _mlp_kernel,
        out_shape=jax.ShapeDtypeStruct((1, out_cols), jnp.float32),
        grid=(num_tiles,),
        in_specs=[
            pl.BlockSpec((tb, IN_FEATURES), lambda i: (i, 0)),
            pl.BlockSpec(wm.shape, lambda i: (0, 0)),
            pl.BlockSpec(wc.shape, lambda i: (0, 0)),
            pl.BlockSpec(w3.shape, lambda i: (0, 0)),
            pl.BlockSpec(slab.shape, lambda i: (0, 0)),
        ],
        out_specs=pl.BlockSpec((1, tb), lambda i: (0, i)),
        compiler_params=pltpu.CompilerParams(
            dimension_semantics=("parallel",)),
        cost_estimate=cost,
    )(x, wm, wc, w3, slab)

    # Drop the rows of any partial last tile and restore the (B, 1) shape.
    return out_row[0, :batch].reshape(batch, 1)


# --------------------------------------------------------------------------
# Pure-JAX reference on the same folded parameters (f32 everywhere).
# --------------------------------------------------------------------------
def _reference_forward(x, params):
    wm, wc, w3, slab = params
    wm = wm.astype(jnp.float32)
    wc = wc.astype(jnp.float32)
    w3 = w3.astype(jnp.float32)
    h = jnp.maximum(x @ wm + slab[0, :], 0.0)
    c = jnp.maximum(h @ wc + slab[1, :HIDDEN_SIZE], 0.0)
    z = jnp.maximum(c @ w3 + slab[2, :HIDDEN_SIZE // 2], 0.0)
    logits = z @ slab[3, :HIDDEN_SIZE // 2] + slab[4, 0]
    return jax.nn.sigmoid(logits).reshape(-1, 1)


if __name__ == "__main__":
    key = jax.random.PRNGKey(0)
    k_x, k_p = jax.random.split(key)
    params = init_params(k_p)

    # Small batch: single-tile path.
    batch = 8
    x = jax.random.normal(k_x, (batch, IN_FEATURES), dtype=jnp.float32)
    out = model_forward(x, params)
    jax.block_until_ready(out)

    assert out.shape == (batch, 1)
    assert bool(jnp.all(jnp.isfinite(out)))
    assert bool(jnp.all((out >= 0.0) & (out <= 1.0)))
    ref = _reference_forward(x, params)
    # bf16 MXU matmuls vs f32 reference: allow a generous absolute tolerance.
    assert bool(jnp.max(jnp.abs(out - ref)) < 0.2)

    # Larger batch: exercises the tiled grid (2 steps) with a partial last tile.
    big = 300
    xb = jax.random.normal(jax.random.PRNGKey(1), (big, IN_FEATURES),
                           dtype=jnp.float32)
    outb = model_forward(xb, params)
    jax.block_until_ready(outb)

    assert outb.shape == (big, 1)
    assert bool(jnp.all(jnp.isfinite(outb)))
    assert bool(jnp.all((outb >= 0.0) & (outb <= 1.0)))
    refb = _reference_forward(xb, params)
    assert bool(jnp.max(jnp.abs(outb - refb)) < 0.2)

    print("KERNEL_OK")
</pallas_src>

<mosaic_0001>
module attributes {stable_mosaic.version = 11 : i64} {
  func.func @_mlp_kernel(%arg0: i32, %arg1: memref<8x118xf32, #tpu.memory_space<vmem>>, %arg2: memref<118x128xbf16, #tpu.memory_space<vmem>>, %arg3: memref<128x64xbf16, #tpu.memory_space<vmem>>, %arg4: memref<64x32xbf16, #tpu.memory_space<vmem>>, %arg5: memref<8x128xf32, #tpu.memory_space<vmem>>, %arg6: memref<1x8xf32, #tpu.memory_space<vmem>>) attributes {dimension_semantics = [#tpu.dimension_semantics<parallel>], iteration_bounds = array<i64: 1>, scalar_prefetch = 0 : i64, scratch_operands = 0 : i64, tpu.core_type = #tpu.core_type<tc>, window_params = [{transform_indices = @transform_0, window_bounds = array<i64: 8, 118>}, {pipeline_mode = #tpu.pipeline_mode<synchronous>, transform_indices = @transform_1, window_bounds = array<i64: 118, 128>}, {pipeline_mode = #tpu.pipeline_mode<synchronous>, transform_indices = @transform_2, window_bounds = array<i64: 128, 64>}, {pipeline_mode = #tpu.pipeline_mode<synchronous>, transform_indices = @transform_3, window_bounds = array<i64: 64, 32>}, {pipeline_mode = #tpu.pipeline_mode<synchronous>, transform_indices = @transform_4, window_bounds = array<i64: 8, 128>}, {transform_indices = @transform_5, window_bounds = array<i64: 1, 8>}]} {
    %c0 = arith.constant 0 : index
    %c0_0 = arith.constant 0 : index
    %0 = vector.load %arg1[%c0, %c0_0] : memref<8x118xf32, #tpu.memory_space<vmem>>, vector<8x118xf32>
    %1 = arith.truncf %0 : vector<8x118xf32> to vector<8x118xbf16>
    %c0_1 = arith.constant 0 : index
    %c0_2 = arith.constant 0 : index
    %2 = vector.load %arg5[%c0_1, %c0_2] : memref<8x128xf32, #tpu.memory_space<vmem>>, vector<1x128xf32>
    %c1 = arith.constant 1 : index
    %c0_3 = arith.constant 0 : index
    %3 = vector.load %arg5[%c1, %c0_3] : memref<8x128xf32, #tpu.memory_space<vmem>>, vector<1x64xf32>
    %c2 = arith.constant 2 : index
    %c0_4 = arith.constant 0 : index
    %4 = vector.load %arg5[%c2, %c0_4] : memref<8x128xf32, #tpu.memory_space<vmem>>, vector<1x32xf32>
    %c3 = arith.constant 3 : index
    %c0_5 = arith.constant 0 : index
    %5 = vector.load %arg5[%c3, %c0_5] : memref<8x128xf32, #tpu.memory_space<vmem>>, vector<1x32xf32>
    %c4 = arith.constant 4 : index
    %c0_6 = arith.constant 0 : index
    %6 = vector.load %arg5[%c4, %c0_6] : memref<8x128xf32, #tpu.memory_space<vmem>>, vector<1x1xf32>
    %c0_7 = arith.constant 0 : index
    %c0_8 = arith.constant 0 : index
    %7 = vector.load %arg2[%c0_7, %c0_8] : memref<118x128xbf16, #tpu.memory_space<vmem>>, vector<118x128xbf16>
    %cst = arith.constant dense<0.000000e+00> : vector<8x128xf32>
    %8 = tpu.matmul %1, %7, %cst {dimension_numbers = #tpu.dot_dimension_numbers<[1], [0], [0], [1], [0, 0, 1, 1], [], []>} : vector<8x118xbf16>, vector<118x128xbf16>, vector<8x128xf32> -> vector<8x128xf32>
    %9 = vector.broadcast %2 : vector<1x128xf32> to vector<8x128xf32>
    %10 = arith.addf %8, %9 : vector<8x128xf32>
    %cst_9 = arith.constant 0.000000e+00 : f32
    %11 = vector.broadcast %cst_9 : f32 to vector<8x128xf32>
    %12 = arith.maximumf %10, %11 : vector<8x128xf32>
    %13 = arith.truncf %12 : vector<8x128xf32> to vector<8x128xbf16>
    %c0_10 = arith.constant 0 : index
    %c0_11 = arith.constant 0 : index
    %14 = vector.load %arg3[%c0_10, %c0_11] : memref<128x64xbf16, #tpu.memory_space<vmem>>, vector<128x64xbf16>
    %cst_12 = arith.constant dense<0.000000e+00> : vector<8x64xf32>
    %15 = tpu.matmul %13, %14, %cst_12 {dimension_numbers = #tpu.dot_dimension_numbers<[1], [0], [0], [1], [0, 0, 1, 1], [], []>} : vector<8x128xbf16>, vector<128x64xbf16>, vector<8x64xf32> -> vector<8x64xf32>
    %16 = vector.broadcast %3 : vector<1x64xf32> to vector<8x64xf32>
    %17 = arith.addf %15, %16 : vector<8x64xf32>
    %cst_13 = arith.constant 0.000000e+00 : f32
    %18 = vector.broadcast %cst_13 : f32 to vector<8x64xf32>
    %19 = arith.maximumf %17, %18 : vector<8x64xf32>
    %20 = arith.truncf %19 : vector<8x64xf32> to vector<8x64xbf16>
    %c0_14 = arith.constant 0 : index
    %c0_15 = arith.constant 0 : index
    %21 = vector.load %arg4[%c0_14, %c0_15] : memref<64x32xbf16, #tpu.memory_space<vmem>>, vector<64x32xbf16>
    %cst_16 = arith.constant dense<0.000000e+00> : vector<8x32xf32>
    %22 = tpu.matmul %20, %21, %cst_16 {dimension_numbers = #tpu.dot_dimension_numbers<[1], [0], [0], [1], [0, 0, 1, 1], [], []>} : vector<8x64xbf16>, vector<64x32xbf16>, vector<8x32xf32> -> vector<8x32xf32>
    %23 = vector.broadcast %4 : vector<1x32xf32> to vector<8x32xf32>
    %24 = arith.addf %22, %23 : vector<8x32xf32>
    %cst_17 = arith.constant 0.000000e+00 : f32
    %25 = vector.broadcast %cst_17 : f32 to vector<8x32xf32>
    %26 = arith.maximumf %24, %25 : vector<8x32xf32>
    %27 = tpu.transpose %26, [1, 0] : vector<8x32xf32> -> vector<32x8xf32>
    %cst_18 = arith.constant dense<0.000000e+00> : vector<1x8xf32>
    %28 = tpu.matmul %5, %27, %cst_18 {dimension_numbers = #tpu.dot_dimension_numbers<[1], [0], [0], [1], [0, 0, 1, 1], [], []>} : vector<1x32xf32>, vector<32x8xf32>, vector<1x8xf32> -> vector<1x8xf32>
    %29 = vector.broadcast %6 : vector<1x1xf32> to vector<1x8xf32>
    %30 = arith.addf %28, %29 : vector<1x8xf32>
    %cst_19 = arith.constant 0.000000e+00 : f32
    %31 = vector.broadcast %cst_19 : f32 to vector<1x8xf32>
    %32 = arith.subf %31, %30 : vector<1x8xf32>
    %33 = math.exp %32 : vector<1x8xf32>
    %cst_20 = arith.constant 1.000000e+00 : f32
    %34 = vector.broadcast %cst_20 : f32 to vector<1x8xf32>
    %35 = arith.addf %34, %33 : vector<1x8xf32>
    %cst_21 = arith.constant 1.000000e+00 : f32
    %36 = vector.broadcast %cst_21 : f32 to vector<1x8xf32>
    %37 = arith.divf %36, %35 : vector<1x8xf32>
    %c0_22 = arith.constant 0 : index
    %c0_23 = arith.constant 0 : index
    %38 = vector.load %arg6[%c0_22, %c0_23] : memref<1x8xf32, #tpu.memory_space<vmem>>, vector<1x8xf32>
    tpu.vector_store %arg6[%c0_22, %c0_23], %37 {strides = array<i32>} : memref<1x8xf32, #tpu.memory_space<vmem>>, vector<1x8xf32>,
    return
  }
  func.func @transform_0(%arg0: i32) -> (i32, i32) {
    %c0_i32 = arith.constant 0 : i32
    %c0_i32_0 = arith.constant 0 : i32
    return %arg0, %c0_i32 : i32, i32
  }
  func.func @transform_1(%arg0: i32) -> (i32, i32) {
    %c0_i32 = arith.constant 0 : i32
    %c0_i32_0 = arith.constant 0 : i32
    %c0_i32_1 = arith.constant 0 : i32
    return %c0_i32, %c0_i32_0 : i32, i32
  }
  func.func @transform_2(%arg0: i32) -> (i32, i32) {
    %c0_i32 = arith.constant 0 : i32
    %c0_i32_0 = arith.constant 0 : i32
    %c0_i32_1 = arith.constant 0 : i32
    return %c0_i32, %c0_i32_0 : i32, i32
  }
  func.func @transform_3(%arg0: i32) -> (i32, i32) {
    %c0_i32 = arith.constant 0 : i32
    %c0_i32_0 = arith.constant 0 : i32
    %c0_i32_1 = arith.constant 0 : i32
    return %c0_i32, %c0_i32_0 : i32, i32
  }
  func.func @transform_4(%arg0: i32) -> (i32, i32) {
    %c0_i32 = arith.constant 0 : i32
    %c0_i32_0 = arith.constant 0 : i32
    %c0_i32_1 = arith.constant 0 : i32
    return %c0_i32, %c0_i32_0 : i32, i32
  }
  func.func @transform_5(%arg0: i32) -> (i32, i32) {
    %c0_i32 = arith.constant 0 : i32
    %c0_i32_0 = arith.constant 0 : i32
    return %c0_i32, %arg0 : i32, i32
  }
}

</mosaic_0001>

<llo_original>
// kernel: model_forward.1
$region0: #{model_forward.1}
  #allocation0 [shape = 'u32[]', space=smem, size = 0x4, offset = 0x4, fixed_abs, tag = 'smem constant byte address 0x4 - core index']
  #allocation1 [shape = 'u32[72,128]{1,0:T(1,128)}', space=vmem, size = 0x9000, scoped, tag = 'internal scratch']
  %s0 = inlined_call_operand.vmem [shape: f32[8,118], index: 0, kind: input, shape index: {}]
  %s1 = inlined_call_operand.vmem [shape: bf16[118,128], index: 1, kind: input, shape index: {}]
  %s2 = inlined_call_operand.vmem [shape: bf16[128,64], index: 2, kind: input, shape index: {}]
  %s3 = inlined_call_operand.vmem [shape: bf16[64,32], index: 3, kind: input, shape index: {}]
  %s4 = inlined_call_operand.vmem [shape: f32[8,128], index: 4, kind: input, shape index: {}]
  %s5 = inlined_call_operand.hbm [shape: f32[1,8], index: 5, kind: output, shape index: {}]
  %s6 = sld [smem:[#allocation0]]
  $region30: #{model_forward.1} parent=0
    _
  %s8 = ssub.s32 1, %s6
  %s9 = scalar_select 0, %s8, %s6
  $region1: #{model_forward.1} parent=0
    #allocation2 [shape = 'u8[512]{0}', space=vmem, size = 0x400, scoped, tag = 'output window, operand 0, single buffered']
    #allocation3 [shape = 's32[1]{0}', space=sflag, size = 0x4, scoped, tag = 'scoped memory for model_forward.1']
    %10 = vsyncpa [#allocation3], 0
    // Predicated region
    $region2: #{model_forward.1} parent=1 // pred_check
      _
    $region3: #{model_forward.1} parent=1 // pred_check_branch
      %12 = sbr.rel (0) target = $region5
    $region4: #{model_forward.1} parent=1 // pred_region
      _
    $region5: #{model_forward.1} parent=1 // pred_fallthru
      _
    // Predicated region
    $region6: #{model_forward.1} parent=1 // pred_check
      _
    $region7: #{model_forward.1} parent=1 // pred_check_branch
      %14 = sbr.rel (0) target = $region9
    $region8: #{model_forward.1} parent=1 // pred_region
      _
    $region9: #{model_forward.1} parent=1 // pred_fallthru
      _
    // Predicated region
    $region10: #{model_forward.1} parent=1 // pred_check
      _
    $region11: #{model_forward.1} parent=1 // pred_check_branch
      %16 = sbr.rel (0) target = $region13
    $region12: #{model_forward.1} parent=1 // pred_region
      _
    $region13: #{model_forward.1} parent=1 // pred_fallthru
      _
    // Predicated region
    $region14: #{model_forward.1} parent=1 // pred_check
      _
    $region15: #{model_forward.1} parent=1 // pred_check_branch
      %18 = sbr.rel (0) target = $region17
    $region16: #{model_forward.1} parent=1 // pred_region
      _
    $region17: #{model_forward.1} parent=1 // pred_fallthru
      _
    // Predicated region
    $region18: #{model_forward.1} parent=1 // pred_check
      _
    $region19: #{model_forward.1} parent=1 // pred_check_branch
      %20 = sbr.rel (0) target = $region21
    $region20: #{model_forward.1} parent=1 // pred_region
      _
    $region21: #{model_forward.1} parent=1 // pred_fallthru
      _
    %v22 = vld [vmem:[%s0] sm:$0xff]
    %v23 = vpack.c.bf16 %v22, %v22
    %v24 = vld [vmem:[%s4] sm:$0x1]
    %v25 = vld [vmem:[%s4 + $0x1] sm:$0x1]
    %v26 = vld [vmem:[%s4 + $0x2] sm:$0x1]
    %v27 = vld [vmem:[%s4 + $0x3] sm:$0x1]
    %v28 = vld [vmem:[%s4 + $0x4] sm:$0x1]
    %v29 = vld [vmem:[%s1] sm:$0xf]
    %v30 = vld [vmem:[%s1 + $0x4] sm:$0xf]
    %v31 = vld [vmem:[%s1 + $0x8] sm:$0xf]
    %v32 = vld [vmem:[%s1 + $0xc] sm:$0xf]
    %v33 = vld [vmem:[%s1 + $0x10] sm:$0xf]
    %v34 = vld [vmem:[%s1 + $0x14] sm:$0xf]
    %v35 = vld [vmem:[%s1 + $0x18] sm:$0xf]
    %v36 = vld [vmem:[%s1 + $0x1c] sm:$0xf]
    %v37 = vld [vmem:[%s1 + $0x20] sm:$0xf]
    %v38 = vld [vmem:[%s1 + $0x24] sm:$0xf]
    %v39 = vld [vmem:[%s1 + $0x28] sm:$0xf]
    %v40 = vld [vmem:[%s1 + $0x2c] sm:$0xf]
    %v41 = vld [vmem:[%s1 + $0x30] sm:$0xf]
    %v42 = vld [vmem:[%s1 + $0x34] sm:$0xf]
    %v43 = vld [vmem:[%s1 + $0x38] sm:$0x7]
    %v44 = vperm.slane %v24, 0
    %v60 = vunpack.c.l.b16 %v29
    %v61 = vunpack.c.l.b16 %v30
    %v62 = vunpack.c.l.b16 %v31
    %v63 = vunpack.c.l.b16 %v32
    %v64 = vunpack.c.l.b16 %v33
    %v65 = vunpack.c.l.b16 %v34
    %v66 = vunpack.c.l.b16 %v35
    %v67 = vunpack.c.l.b16 %v36
    %v68 = vunpack.c.l.b16 %v37
    %v69 = vunpack.c.l.b16 %v38
    %v70 = vunpack.c.l.b16 %v39
    %v71 = vunpack.c.l.b16 %v40
    %v72 = vunpack.c.l.b16 %v41
    %v73 = vunpack.c.l.b16 %v42
    %v74 = vunpack.c.l.b16 %v43
    %v75 = vpack.c.b16 %v61, %v60
    %v76 = vpack.c.b16 %v63, %v62
    %v77 = vpack.c.b16 %v65, %v64
    %v78 = vpack.c.b16 %v67, %v66
    %v79 = vpack.c.b16 %v69, %v68
    %v80 = vpack.c.b16 %v71, %v70
    %v81 = vpack.c.b16 %v73, %v72
    %v82 = vpack.c.b16 %v74, %v74
    %vm90 = vcmask 965632
    %v92 = vsel %vm90, %v23, 0
    %vm94 = vcmask 1042432
    %v96 = vsel %vm94, %v82, 0
    %98 = vmatpush.bf16.msra.mxu0 %v96
    %99 = vmatpush.bf16.msra.mxu0 %v81
    %100 = vmatpush.bf16.msra.mxu0 %v80
    %101 = vmatpush.bf16.msra.mxu0 %v79
    %102 = vmatpush.bf16.msra.mxu0 %v78
    %103 = vmatpush.bf16.msra.mxu0 %v77
    %104 = vmatpush.bf16.msra.mxu0 %v76
    %105 = vmatpush.bf16.msra.mxu0 %v75
    %106 = vmatmul.bf16.gmra.mxu0 %v92
    %v107 = vpop.f32.mrf.mxu0
    %v108 = vadd.f32 %v44, %v107
    %v109 = vpop.f32.mrf.mxu0
    %110 = vdwg.mxu0
    %v111 = vmax.f32 %v108, 0.0
    %v112 = vpack.c.bf16 %v111, %v111
    %v113 = vld [vmem:[%s2] sm:$0xf]
    %v114 = vld [vmem:[%s2 + $0x4] sm:$0xf]
    %v115 = vld [vmem:[%s2 + $0x8] sm:$0xf]
    %v116 = vld [vmem:[%s2 + $0xc] sm:$0xf]
    %v117 = vld [vmem:[%s2 + $0x10] sm:$0xf]
    %v118 = vld [vmem:[%s2 + $0x14] sm:$0xf]
    %v119 = vld [vmem:[%s2 + $0x18] sm:$0xf]
    %v120 = vld [vmem:[%s2 + $0x1c] sm:$0xf]
    %v121 = vld [vmem:[%s2 + $0x20] sm:$0xf]
    %v122 = vld [vmem:[%s2 + $0x24] sm:$0xf]
    %v123 = vld [vmem:[%s2 + $0x28] sm:$0xf]
    %v124 = vld [vmem:[%s2 + $0x2c] sm:$0xf]
    %v125 = vld [vmem:[%s2 + $0x30] sm:$0xf]
    %v126 = vld [vmem:[%s2 + $0x34] sm:$0xf]
    %v127 = vld [vmem:[%s2 + $0x38] sm:$0xf]
    %v128 = vld [vmem:[%s2 + $0x3c] sm:$0xf]
    %v129 = vperm.slane %v25, 0
    %v146 = vunpack.c.l.b16 %v113
    %v147 = vunpack.c.l.b16 %v114
    %v148 = vunpack.c.l.b16 %v115
    %v149 = vunpack.c.l.b16 %v116
    %v150 = vunpack.c.l.b16 %v117
    %v151 = vunpack.c.l.b16 %v118
    %v152 = vunpack.c.l.b16 %v119
    %v153 = vunpack.c.l.b16 %v120
    %v154 = vunpack.c.l.b16 %v121
    %v155 = vunpack.c.l.b16 %v122
    %v156 = vunpack.c.l.b16 %v123
    %v157 = vunpack.c.l.b16 %v124
    %v158 = vunpack.c.l.b16 %v125
    %v159 = vunpack.c.l.b16 %v126
    %v160 = vunpack.c.l.b16 %v127
    %v161 = vunpack.c.l.b16 %v128
    %v162 = vpack.c.b16 %v147, %v146
    %v163 = vpack.c.b16 %v149, %v148
    %v164 = vpack.c.b16 %v151, %v150
    %v165 = vpack.c.b16 %v153, %v152
    %v166 = vpack.c.b16 %v155, %v154
    %v167 = vpack.c.b16 %v157, %v156
    %v168 = vpack.c.b16 %v159, %v158
    %v169 = vpack.c.b16 %v161, %v160
    %178 = vmatpush.bf16.msra.mxu0 %v169
    %179 = vmatpush.bf16.msra.mxu0 %v168
    %180 = vmatpush.bf16.msra.mxu0 %v167
    %181 = vmatpush.bf16.msra.mxu0 %v166
    %182 = vmatpush.bf16.msra.mxu0 %v165
    %183 = vmatpush.bf16.msra.mxu0 %v164
    %184 = vmatpush.bf16.msra.mxu0 %v163
    %185 = vmatpush.bf16.msra.mxu0 %v162
    %186 = vmatmul.bf16.gmra.mxu0 %v112
    %v187 = vpop.f32.mrf.mxu0
    %v188 = vadd.f32 %v129, %v187
    %v189 = vpop.f32.mrf.mxu0
    %190 = vdwg.mxu0
    %v191 = vmax.f32 %v188, 0.0
    %v192 = vpack.c.bf16 %v191, %v191
    %v193 = vld [vmem:[%s3] sm:$0xf]
    %v194 = vld [vmem:[%s3 + $0x4] sm:$0xf]
    %v195 = vld [vmem:[%s3 + $0x8] sm:$0xf]
    %v196 = vld [vmem:[%s3 + $0xc] sm:$0xf]
    %v197 = vld [vmem:[%s3 + $0x10] sm:$0xf]
    %v198 = vld [vmem:[%s3 + $0x14] sm:$0xf]
    %v199 = vld [vmem:[%s3 + $0x18] sm:$0xf]
    %v200 = vld [vmem:[%s3 + $0x1c] sm:$0xf]
    %v201 = vperm.slane %v26, 0
    %v210 = vunpack.c.l.b16 %v193
    %v211 = vunpack.c.l.b16 %v194
    %v212 = vunpack.c.l.b16 %v195
    %v213 = vunpack.c.l.b16 %v196
    %v214 = vunpack.c.l.b16 %v197
    %v215 = vunpack.c.l.b16 %v198
    %v216 = vunpack.c.l.b16 %v199
    %v217 = vunpack.c.l.b16 %v200
    %v218 = vpack.c.b16 %v211, %v210
    %v219 = vpack.c.b16 %v213, %v212
    %v220 = vpack.c.b16 %v215, %v214
    %v221 = vpack.c.b16 %v217, %v216
    %vm226 = vcmask 523264
    %v228 = vsel %vm226, %v192, 0
    %230 = vmatpush.bf16.msra.mxu0 0
    %231 = vmatpush.bf16.msra.mxu0 0
    %232 = vmatpush.bf16.msra.mxu0 0
    %233 = vmatpush.bf16.msra.mxu0 0
    %234 = vmatpush.bf16.msra.mxu0 %v221
    %235 = vmatpush.bf16.msra.mxu0 %v220
    %236 = vmatpush.bf16.msra.mxu0 %v219
    %237 = vmatpush.bf16.msra.mxu0 %v218
    %238 = vmatmul.bf16.gmra.mxu0 %v228
    %v239 = vpop.f32.mrf.mxu0
    %v240 = vadd.f32 %v201, %v239
    %v241 = vpop.f32.mrf.mxu0
    %242 = vdwg.mxu0
    %v243 = vmax.f32 %v240, 0.0
    %245 = vset.pattern.permute.xlu0 0
    %246 = vperm.xlu0 %245, %v28
    %v247 = vpop.permute.xlu0 %246
    %vm249 = vcmask 261120
    %v251 = vsel %vm249, %v27, 0
    %v254 = vsel %vm249, %v243, 0
    %256 = vmatpush.xpose.msra.mxu0 0.0
    %257 = vmatpush.xpose.msra.mxu0 0.0
    %258 = vmatpush.xpose.msra.mxu0 0.0
    %259 = vmatpush.xpose.msra.mxu0 0.0
    %260 = vmatpush.xpose.msra.mxu0 0.0
    %261 = vmatpush.xpose.msra.mxu0 0.0
    %262 = vmatpush.xpose.msra.mxu0 0.0
    %263 = vmatpush.xpose.msra.mxu0 0.0
    %264 = vmatpush.xpose.msra.mxu0 0.0
    %265 = vmatpush.xpose.msra.mxu0 0.0
    %266 = vmatpush.xpose.msra.mxu0 0.0
    %267 = vmatpush.xpose.msra.mxu0 0.0
    %268 = vmatpush.xpose.msra.mxu0 0.0
    %269 = vmatpush.xpose.msra.mxu0 0.0
    %270 = vmatpush.xpose.msra.mxu0 0.0
    %271 = vmatpush.xpose.msra.mxu0 %v254
    %272 = vmatmul.f32.gmra.mxu0 %v251
    %v273 = vpop.f32.mrf.mxu0
    %v274 = vadd.f32 %v247, %v273
    %275 = vdwg.mxu0
    %v276 = vsub.f32 0.0, %v274
    %v277 = vmul.f32 %v276, 1.442695
    %v278 = vpow.pop %v277
    %v279 = vadd.f32 %v278, 1.0
    %v280 = vrcp.pop %v279
    %v281 = vmul.f32 %v279, %v280
    %v282 = vsub.f32 1.0, %v281
    %v283 = vmul.f32 %v280, %v282
    %v284 = vadd.f32 %v280, %v283
    %vm285 = vweird.f32 %v279
    %vm286 = vweird.f32 %v280
    %vm287 = vmor %vm285, %vm286
    %v288 = vsel %vm287, %v280, %v284
    %v289 = vand.u32 2147483647, %v279
    %vm290 = vcmp.eq.f32.partialorder %v289, 8.507059e+37
    %v291 = vand.u32 %v279, 2147483648
    %v292 = vor.u32 1.1754944e-38, %v291
    %v293 = vsel %vm290, %v292, %v288
    %v294 = vmul.f32 1.0, %v293
    %vm295 = vcmask 57344
    %296 = vst.msk [vmem:[#allocation2] sm:$0x1] %vm295, %v294
    // Predicated region
    $region22: #{model_forward.1} parent=1 // pred_check
      _
    $region23: #{model_forward.1} parent=1 // pred_check_branch
      %298 = sbr.rel (0) target = $region25
    $region24: #{model_forward.1} parent=1 // pred_region
      %300 = vsyncadd [#allocation3], 0
      %s302 = sshll.u32 [#allocation2], 4
      %s303 = int_to_ptr.vmem [resolvable:$true] %s302
      %s304 = sshll.u32 %s5, 4
      %s305 = int_to_ptr.hbm [resolvable:$true] %s304
      %307 = dma.vmem_to_hbm [thread:$0]  %s303, 16, %s305, [#allocation3]
    $region25: #{model_forward.1} parent=1 // pred_fallthru
      _
    // Predicated region
    $region26: #{model_forward.1} parent=1 // pred_check
      _
    $region27: #{model_forward.1} parent=1 // pred_check_branch
      %309 = sbr.rel (0) target = $region29
    $region28: #{model_forward.1} parent=1 // pred_region
      %311 = dma.done [#allocation3], 16
    $region29: #{model_forward.1} parent=1 // pred_fallthru
      _
    %312 = vsyncpa [#allocation3], 1

</llo_original>
